<compile_context>
chip_gen: v5e
topology: v5e:2x2
jax: 0.10.0
libtpu: 0.0.40
codegen_flags: <defaults>
</compile_context>

<pallas_src>
import jax
import jax.numpy as jnp
from jax.experimental import pallas as pl
from jax.experimental.pallas import tpu as pltpu


# ------------------------------ helpers --------------------------------------
def _round_up(x, m):
    return ((x + m - 1) // m) * m


def _vmem_capacity_bytes():
    """Physical VMEM capacity of the local TPU generation (with safe fallback)."""
    try:
        info = pltpu.get_tpu_info()
        cap = int(getattr(info, "vmem_capacity_bytes", 0))
        if cap > 0:
            return cap
    except Exception:
        pass
    return 64 * 1024 * 1024  # conservative (v7x-sized) fallback


def _pick_dim_tile(dim, pref):
    """Tile for a lane-major (last-dim) axis.

    Small dims: use the full dim (block == full array dim is always legal, no
    padding, no masked-store overhead beyond what the tiny dim forces anyway).
    Large dims: pad once to a 128-multiple and use the largest 128-multiple
    tile <= pref that divides the padded dim (minimal padding, no per-call
    ragged handling on K/N).
    Returns (tile, padded_dim).
    """
    if dim <= pref:
        return dim, dim
    dpad = _round_up(dim, 128)
    for t in range(pref, 127, -128):
        if dpad % t == 0:
            return t, dpad
    return 128, dpad


# ----------------------------- Pallas kernels --------------------------------
def _mm_bias_f32out_kernel(x_ref, wt_ref, b_ref, o_ref):
    """f32 output: accumulate directly into the resident output block."""
    k = pl.program_id(2)

    @pl.when(k == 0)
    def _():
        o_ref[...] = jnp.broadcast_to(b_ref[...].astype(jnp.float32), o_ref.shape)

    o_ref[...] += jnp.dot(x_ref[...], wt_ref[...],
                          preferred_element_type=jnp.float32)


def _mm_f32out_kernel(x_ref, wt_ref, o_ref):
    k = pl.program_id(2)

    @pl.when(k == 0)
    def _():
        o_ref[...] = jnp.zeros_like(o_ref)

    o_ref[...] += jnp.dot(x_ref[...], wt_ref[...],
                          preferred_element_type=jnp.float32)


def _mm_bias_acc_kernel(x_ref, wt_ref, b_ref, o_ref, acc_ref):
    """Narrow output dtypes: f32 scratch accumulator, downcast at last k."""
    k = pl.program_id(2)

    @pl.when(k == 0)
    def _():
        acc_ref[...] = jnp.zeros_like(acc_ref)

    acc_ref[...] += jnp.dot(x_ref[...], wt_ref[...],
                            preferred_element_type=jnp.float32)

    @pl.when(k == pl.num_programs(2) - 1)
    def _():
        o_ref[...] = (acc_ref[...] + b_ref[...].astype(jnp.float32)).astype(o_ref.dtype)


def _mm_acc_kernel(x_ref, wt_ref, o_ref, acc_ref):
    k = pl.program_id(2)

    @pl.when(k == 0)
    def _():
        acc_ref[...] = jnp.zeros_like(acc_ref)

    acc_ref[...] += jnp.dot(x_ref[...], wt_ref[...],
                            preferred_element_type=jnp.float32)

    @pl.when(k == pl.num_programs(2) - 1)
    def _():
        o_ref[...] = acc_ref[...].astype(o_ref.dtype)


def pallas_linear(x2d, w_t, bias2d, *, tm, tn, tk, out_dtype,
                  vmem_limit_bytes, extra_w_buffer=False):
    """out = x2d @ w_t (+ bias2d), tiled over (M, N, K), f32 accumulation.

    All dims must already be exact multiples of the tile sizes (a tile may
    equal the full dim).
    """
    M, K = x2d.shape
    K2, N = w_t.shape
    assert K == K2 and M % tm == 0 and N % tn == 0 and K % tk == 0

    grid = (M // tm, N // tn, K // tk)

    x_spec = pl.BlockSpec((tm, tk), lambda i, j, k: (i, k))
    w_idx = lambda i, j, k: (k, j)
    w_spec = pl.BlockSpec((tk, tn), w_idx)
    if extra_w_buffer:
        # Weight-streaming regime (single M block, many K steps): deepen the
        # dominant weight DMA stream to 3 buffers to hide exposed DMA latency.
        try:
            w_spec = pl.BlockSpec((tk, tn), w_idx, pipeline_mode=pl.Buffered(3))
        except Exception:
            w_spec = pl.BlockSpec((tk, tn), w_idx)
    o_spec = pl.BlockSpec((tm, tn), lambda i, j, k: (i, j))

    xb = jnp.dtype(x2d.dtype).itemsize
    wb = jnp.dtype(w_t.dtype).itemsize
    ob = jnp.dtype(out_dtype).itemsize
    cost = pl.CostEstimate(
        flops=2 * M * N * K,
        transcendentals=0,
        # x is re-read once per N block, W once per M block under the (i,j,k) grid.
        bytes_accessed=(grid[1] * M * K * xb + grid[0] * K * N * wb + M * N * ob),
    )
    params = pltpu.CompilerParams(
        dimension_semantics=("parallel", "parallel", "arbitrary"),
        vmem_limit_bytes=int(vmem_limit_bytes),
    )

    direct_f32 = jnp.dtype(out_dtype) == jnp.dtype(jnp.float32)
    if direct_f32:
        scratch = []
        kern = _mm_bias_f32out_kernel if bias2d is not None else _mm_f32out_kernel
    else:
        scratch = [pltpu.VMEM((tm, tn), jnp.float32)]
        kern = _mm_bias_acc_kernel if bias2d is not None else _mm_acc_kernel

    in_specs = [x_spec, w_spec]
    args = [x2d, w_t]
    if bias2d is not None:
        in_specs.append(pl.BlockSpec((1, tn), lambda i, j, k: (0, j)))
        args.append(bias2d)

    return pl.pallas_call(
        kern,
        out_shape=jax.ShapeDtypeStruct((M, N), out_dtype),
        grid=grid,
        in_specs=in_specs,
        out_specs=o_spec,
        scratch_shapes=scratch,
        compiler_params=params,
        cost_estimate=cost,
    )(*args)


# --------------------------- column_prune module ------------------------------
class ColumnPrune:
    """JAX equivalent of the PyTorch `column_prune` module (forward pass)."""

    # Tile preferences for bf16 operands + f32 accumulation.  Worst-case live
    # VMEM at these sizes (~14 MiB) is well under every generation's budget;
    # the cap logic below shrinks them if a future config would overshoot.
    TM_PREF = 512
    TN_PREF = 1024
    TK_PREF = 1024

    def __init__(self, weight, bias, rank_indices):
        # weight: (out_features, in_features), like nn.Linear.weight
        out_f, in_f = weight.shape
        rank_indices = jnp.asarray(rank_indices, dtype=jnp.int32)

        # mirror the PyTorch __init__ index fixups (init-time only; host sync OK)
        if not bool(jnp.any(rank_indices == 0)):
            rank_indices = rank_indices.at[-1].set(0)
        if rank_indices.shape[0] >= in_f:
            rank_indices = jnp.arange(in_f, dtype=jnp.int32)

        all_cols = set(range(in_f))
        trainable_cols = set(int(i) for i in rank_indices)
        non_trainable = sorted(all_cols - trainable_cols)

        self.total_weight_shape = (out_f, in_f)
        self.rank_indices = rank_indices
        self.non_trainable_indices = jnp.asarray(non_trainable, dtype=jnp.int32)
        self.trainable_weight = weight[:, rank_indices]
        if len(non_trainable) == 0:
            self.non_trainable_weight = jnp.zeros_like(self.trainable_weight)
        else:
            self.non_trainable_weight = weight[:, self.non_trainable_indices]
        self.bias = bias  # (out_features,) or None

        # generation-aware VMEM budget (<= 3/4 of physical capacity)
        self._vmem_budget = (_vmem_capacity_bytes() * 3) // 4

        # hoisted out of the hot path: rebuild + pack the full weight once
        self._refresh_packed_params()

    # -- packing ---------------------------------------------------------------
    @staticmethod
    def _live_vmem_bytes(tm, tn, tk):
        # 2x double-buffered x (bf16), up to 3x weight buffers (bf16),
        # 2x output (f32), f32 acc scratch, double-buffered bias.
        return (2 * tm * tk * 2 + 3 * tk * tn * 2 + 2 * tm * tn * 4
                + tm * tn * 4 + 2 * tn * 4)

    def _refresh_packed_params(self):
        out_f, in_f = self.total_weight_shape
        w_dtype = self.trainable_weight.dtype
        full_weight = jnp.zeros((out_f, in_f), dtype=w_dtype)
        full_weight = full_weight.at[:, self.rank_indices].set(self.trainable_weight)
        if self.non_trainable_indices.shape[0] > 0:
            full_weight = full_weight.at[:, self.non_trainable_indices].set(
                self.non_trainable_weight)

        K, N = in_f, out_f  # matmul view: x(M,K) @ W^T(K,N)

        # shrink tile preferences if they would blow the per-generation cap
        tm_p, tn_p, tk_p = self.TM_PREF, self.TN_PREF, self.TK_PREF
        while self._live_vmem_bytes(tm_p, tn_p, tk_p) > self._vmem_budget:
            if tk_p >= tn_p and tk_p > 256:
                tk_p //= 2
            elif tn_p > 256:
                tn_p //= 2
            elif tm_p > 64:
                tm_p //= 2
            else:
                break
        self._tm_pref = tm_p

        self._tk, Kp = _pick_dim_tile(K, tk_p)
        self._tn, Np = _pick_dim_tile(N, tn_p)

        # Pack W^T once: bf16 MXU-native operand, zero-padded to (Kp, Np).
        # Zero K-padding keeps the reduction exact; zero N-padding is sliced off.
        # TODO(synk): if the pruned weight is ever quantized, use int8 on
        # v5e/v6e but fp8 on v7x (no integer MXU path there).
        w_t = full_weight.T.astype(jnp.bfloat16)
        if (Kp, Np) != (K, N):
            w_t = jnp.pad(w_t, ((0, Kp - K), (0, Np - N)))
        self._w_t_packed = w_t

        if self.bias is not None:
            b = self.bias.astype(jnp.float32).reshape(1, N)
            if Np != N:
                b = jnp.pad(b, ((0, 0), (0, Np - N)))
            self._bias_packed = b
        else:
            self._bias_packed = None
        self._Kp, self._Np = Kp, Np

    def refresh(self):
        """Re-pack after parameter updates."""
        self._refresh_packed_params()

    # -- forward ---------------------------------------------------------------
    def __call__(self, x):
        out_f, in_f = self.total_weight_shape
        lead = x.shape[:-1]
        out_dtype = x.dtype
        x2d = x.reshape(-1, in_f)
        M = x2d.shape[0]

        # bf16 operands for the MXU (accumulation stays f32 in-kernel)
        if jnp.issubdtype(x2d.dtype, jnp.floating) and jnp.dtype(x2d.dtype).itemsize >= 4:
            x2d = x2d.astype(jnp.bfloat16)

        # M tiling: small/medium M -> single full-extent block, no per-call pad.
        if M <= self._tm_pref:
            tm, Mp = M, M
        else:
            tm = self._tm_pref
            Mp = _round_up(M, tm)

        # Per-call padding only on cold paths (ragged large M, or in_f that the
        # init-time packing had to round up).  Fast path: zero extra HBM passes.
        pad_m, pad_k = Mp - M, self._Kp - in_f
        if pad_m or pad_k:
            x2d = jnp.pad(x2d, ((0, pad_m), (0, pad_k)))

        # Keep >=2 parallel N blocks when there is a single M block so both
        # v7x TensorCores get work on GEMV-ish shapes (no effect on v5e/v6e).
        tn = self._tn
        grid_m = Mp // tm
        if grid_m == 1:
            while (self._Np // tn) < 2 and tn % 256 == 0:
                tn //= 2

        grid_k = self._Kp // self._tk
        out2d = pallas_linear(
            x2d, self._w_t_packed, self._bias_packed,
            tm=tm, tn=tn, tk=self._tk, out_dtype=out_dtype,
            vmem_limit_bytes=self._vmem_budget,
            extra_w_buffer=(grid_m == 1 and grid_k >= 4))

        if pad_m or self._Np != out_f:
            out2d = out2d[:M, :out_f]
        return out2d.reshape(*lead, out_f)


# ---------------------------------- main --------------------------------------
if __name__ == "__main__":
    key = jax.random.PRNGKey(0)
    k_w, k_b, k_x, k_x2 = jax.random.split(key, 4)

    in_features = 32
    out_features = 32
    batch, seq = 2, 8

    # deterministic "pretrained" Linear parameters
    weight = jax.random.normal(k_w, (out_features, in_features), dtype=jnp.float32) * 0.1
    bias = jax.random.normal(k_b, (out_features,), dtype=jnp.float32) * 0.1

    # trainable column indices (contains 0, matching the module's invariant)
    rank_indices = [0, 3, 5, 12, 17, 30]

    layer = ColumnPrune(weight, bias, rank_indices)

    # reconstructed reference weight (same scatter the torch module performs)
    full_w = jnp.zeros((out_features, in_features), dtype=jnp.float32)
    full_w = full_w.at[:, layer.rank_indices].set(layer.trainable_weight)
    full_w = full_w.at[:, layer.non_trainable_indices].set(layer.non_trainable_weight)
    # reference with bf16-rounded operands (the kernel feeds the MXU bf16, acc f32)
    w_bf = full_w.astype(jnp.bfloat16).astype(jnp.float32)

    # primary check: (2, 8, 32) -> M = 16
    x = jax.random.normal(k_x, (batch, seq, in_features), dtype=jnp.float32)
    out = jax.block_until_ready(layer(x))
    ref = x.astype(jnp.bfloat16).astype(jnp.float32) @ w_bf.T + bias
    ref_f32 = x @ full_w.T + bias
    assert out.shape == (batch, seq, out_features)
    assert out.dtype == x.dtype
    assert jnp.allclose(out, ref, atol=2e-3, rtol=2e-3)
    assert jnp.allclose(out, ref_f32, atol=5e-2, rtol=5e-2)

    # secondary check exercising a ragged M (full-extent block path): M = 15
    x2 = jax.random.normal(k_x2, (3, 5, in_features), dtype=jnp.float32)
    out2 = jax.block_until_ready(layer(x2))
    ref2 = x2.astype(jnp.bfloat16).astype(jnp.float32) @ w_bf.T + bias
    assert out2.shape == (3, 5, out_features)
    assert jnp.allclose(out2, ref2, atol=2e-3, rtol=2e-3)

    print("KERNEL_OK")
</pallas_src>

<mosaic_0001>
module attributes {stable_mosaic.version = 11 : i64} {
  func.func @_mm_bias_f32out_kernel(%arg0: i32, %arg1: i32, %arg2: i32, %arg3: memref<16x32xbf16, #tpu.memory_space<vmem>>, %arg4: memref<32x32xbf16, #tpu.memory_space<vmem>>, %arg5: memref<1x32xf32, #tpu.memory_space<vmem>>, %arg6: memref<16x32xf32, #tpu.memory_space<vmem>>) attributes {dimension_semantics = [#tpu.dimension_semantics<parallel>, #tpu.dimension_semantics<parallel>, #tpu.dimension_semantics<arbitrary>], iteration_bounds = array<i64: 1, 1, 1>, scalar_prefetch = 0 : i64, scratch_operands = 0 : i64, tpu.core_type = #tpu.core_type<tc>, window_params = [{transform_indices = @transform_0, window_bounds = array<i64: 16, 32>}, {transform_indices = @transform_1, window_bounds = array<i64: 32, 32>}, {transform_indices = @transform_2, window_bounds = array<i64: 1, 32>}, {transform_indices = @transform_3, window_bounds = array<i64: 16, 32>}]} {
    %c0_i32 = arith.constant 0 : i32
    %0 = arith.cmpi eq, %arg2, %c0_i32 : i32
    %1 = arith.extui %0 : i1 to i32
    %c0_i32_0 = arith.constant 0 : i32
    %2 = arith.cmpi ne, %1, %c0_i32_0 : i32
    scf.if %2 {
      %c0_8 = arith.constant 0 : index
      %c0_9 = arith.constant 0 : index
      %9 = vector.load %arg5[%c0_8, %c0_9] : memref<1x32xf32, #tpu.memory_space<vmem>>, vector<1x32xf32>
      %10 = vector.shape_cast %9 : vector<1x32xf32> to vector<1x32xf32>
      %11 = vector.broadcast %10 : vector<1x32xf32> to vector<16x32xf32>
      %c0_10 = arith.constant 0 : index
      %c0_11 = arith.constant 0 : index
      %12 = vector.load %arg6[%c0_10, %c0_11] : memref<16x32xf32, #tpu.memory_space<vmem>>, vector<16x32xf32>
      tpu.vector_store %arg6[%c0_10, %c0_11], %11 {strides = array<i32>} : memref<16x32xf32, #tpu.memory_space<vmem>>, vector<16x32xf32>,
    } else {
    }
    %c0 = arith.constant 0 : index
    %c0_1 = arith.constant 0 : index
    %3 = vector.load %arg6[%c0, %c0_1] : memref<16x32xf32, #tpu.memory_space<vmem>>, vector<16x32xf32>
    %c0_2 = arith.constant 0 : index
    %c0_3 = arith.constant 0 : index
    %4 = vector.load %arg3[%c0_2, %c0_3] : memref<16x32xbf16, #tpu.memory_space<vmem>>, vector<16x32xbf16>
    %c0_4 = arith.constant 0 : index
    %c0_5 = arith.constant 0 : index
    %5 = vector.load %arg4[%c0_4, %c0_5] : memref<32x32xbf16, #tpu.memory_space<vmem>>, vector<32x32xbf16>
    %cst = arith.constant dense<0.000000e+00> : vector<16x32xf32>
    %6 = tpu.matmul %4, %5, %cst {dimension_numbers = #tpu.dot_dimension_numbers<[1], [0], [0], [1], [0, 0, 1, 1], [], []>} : vector<16x32xbf16>, vector<32x32xbf16>, vector<16x32xf32> -> vector<16x32xf32>
    %7 = arith.addf %3, %6 : vector<16x32xf32>
    %c0_6 = arith.constant 0 : index
    %c0_7 = arith.constant 0 : index
    %8 = vector.load %arg6[%c0_6, %c0_7] : memref<16x32xf32, #tpu.memory_space<vmem>>, vector<16x32xf32>
    tpu.vector_store %arg6[%c0_6, %c0_7], %7 {strides = array<i32>} : memref<16x32xf32, #tpu.memory_space<vmem>>, vector<16x32xf32>,
    return
  }
  func.func @transform_0(%arg0: i32, %arg1: i32, %arg2: i32) -> (i32, i32) {
    %c0_i32 = arith.constant 0 : i32
    return %arg0, %arg2 : i32, i32
  }
  func.func @transform_1(%arg0: i32, %arg1: i32, %arg2: i32) -> (i32, i32) {
    %c0_i32 = arith.constant 0 : i32
    return %arg2, %arg1 : i32, i32
  }
  func.func @transform_2(%arg0: i32, %arg1: i32, %arg2: i32) -> (i32, i32) {
    %c0_i32 = arith.constant 0 : i32
    %c0_i32_0 = arith.constant 0 : i32
    return %c0_i32, %arg1 : i32, i32
  }
  func.func @transform_3(%arg0: i32, %arg1: i32, %arg2: i32) -> (i32, i32) {
    %c0_i32 = arith.constant 0 : i32
    return %arg0, %arg1 : i32, i32
  }
}

</mosaic_0001>

<llo_original>
// kernel: tpu_custom_call.1
$region0: #{tpu_custom_call.1}
  #allocation0 [shape = 'u32[]', space=smem, size = 0x4, offset = 0x4, fixed_abs, tag = 'smem constant byte address 0x4 - core index']
  #allocation1 [shape = 'u32[72,128]{1,0:T(1,128)}', space=vmem, size = 0x9000, scoped, tag = 'internal scratch']
  %s0 = inlined_call_operand.hbm [shape: bf16[16,32], index: 0, kind: input, shape index: {}]
  %s1 = inlined_call_operand.hbm [shape: bf16[32,32], index: 1, kind: input, shape index: {}]
  %s2 = inlined_call_operand.vmem [shape: f32[1,32], index: 2, kind: input, shape index: {}]
  %s3 = inlined_call_operand.hbm [shape: f32[16,32], index: 3, kind: output, shape index: {}]
  %s4 = sld [smem:[#allocation0]]
  $region34: #{tpu_custom_call.1} parent=0
    _
  %s6 = ssub.s32 1, %s4
  %s7 = scalar_select 0, %s6, %s4
  $region1: #{tpu_custom_call.1} parent=0
    #allocation2 [shape = 'u8[4096]{0}', space=vmem, size = 0x1000, scoped, tag = 'input window, operand 0, single buffered']
    #allocation3 [shape = 's32[1]{0}', space=sflag, size = 0x4, scoped, tag = 'scoped memory for tpu_custom_call.1']
    #allocation4 [shape = 's32[1]{0}', space=sflag, size = 0x4, scoped, tag = 'scoped memory for tpu_custom_call.1']
    #allocation5 [shape = 'u8[8192]{0}', space=vmem, size = 0x2000, scoped, tag = 'input window, operand 1, single buffered']
    #allocation6 [shape = 's32[1]{0}', space=sflag, size = 0x4, scoped, tag = 'scoped memory for tpu_custom_call.1']
    #allocation7 [shape = 'u8[8192]{0}', space=vmem, size = 0x2000, scoped, tag = 'output window, operand 0, single buffered']
    %8 = vsyncpa [#allocation3], 0
    %9 = vsyncpa [#allocation6], 0
    %10 = vsyncpa [#allocation4], 0
    // Predicated region
    $region2: #{tpu_custom_call.1} parent=1 // pred_check
      _
    $region3: #{tpu_custom_call.1} parent=1 // pred_check_branch
      %12 = sbr.rel (0) target = $region5
    $region4: #{tpu_custom_call.1} parent=1 // pred_region
      %14 = vsyncadd [#allocation3], 0
      %s15 = sshll.u32 %s0, 4
      %s16 = int_to_ptr.hbm [resolvable:$true] %s15
      %s17 = sshll.u32 [#allocation2], 4
      %s18 = int_to_ptr.vmem [resolvable:$true] %s17
      %23 = dma.hbm_to_vmem [thread:$0]  %s16, 128, %s18, [#allocation3], 64, 64, 4
    $region5: #{tpu_custom_call.1} parent=1 // pred_fallthru
      _
    // Predicated region
    $region6: #{tpu_custom_call.1} parent=1 // pred_check
      _
    $region7: #{tpu_custom_call.1} parent=1 // pred_check_branch
      %25 = sbr.rel (0) target = $region9
    $region8: #{tpu_custom_call.1} parent=1 // pred_region
      %27 = vsyncadd [#allocation6], 0
      %s28 = sshll.u32 %s1, 4
      %s29 = int_to_ptr.hbm [resolvable:$true] %s28
      %s30 = sshll.u32 [#allocation5], 4
      %s31 = int_to_ptr.vmem [resolvable:$true] %s30
      %36 = dma.hbm_to_vmem [thread:$0]  %s29, 256, %s31, [#allocation6], 64, 64, 4
    $region9: #{tpu_custom_call.1} parent=1 // pred_fallthru
      _
    // Predicated region
    $region10: #{tpu_custom_call.1} parent=1 // pred_check
      _
    $region11: #{tpu_custom_call.1} parent=1 // pred_check_branch
      %38 = sbr.rel (0) target = $region13
    $region12: #{tpu_custom_call.1} parent=1 // pred_region
      _
    $region13: #{tpu_custom_call.1} parent=1 // pred_fallthru
      _
    // Predicated region
    $region14: #{tpu_custom_call.1} parent=1 // pred_check
      _
    $region15: #{tpu_custom_call.1} parent=1 // pred_check_branch
      %40 = sbr.rel (0) target = $region17
    $region16: #{tpu_custom_call.1} parent=1 // pred_region
      %42 = dma.done [#allocation3], 128
    $region17: #{tpu_custom_call.1} parent=1 // pred_fallthru
      _
    // Predicated region
    $region18: #{tpu_custom_call.1} parent=1 // pred_check
      _
    $region19: #{tpu_custom_call.1} parent=1 // pred_check_branch
      %44 = sbr.rel (0) target = $region21
    $region20: #{tpu_custom_call.1} parent=1 // pred_region
      %46 = dma.done [#allocation6], 256
    $region21: #{tpu_custom_call.1} parent=1 // pred_fallthru
      _
    %p48 = scmp.eq.s32.totalorder 0, 0
    // Predicated region
    $region22: #{tpu_custom_call.1} parent=1 // pred_check
      %p49 = pneg %p48
    $region23: #{tpu_custom_call.1} parent=1 // pred_check_branch
      %51 = sbr.rel (%p49) target = $region25
    $region24: #{tpu_custom_call.1} parent=1 // pred_region
      %v52 = vld [vmem:[%s2] sm:$0x1]
      %v54 = vperm.slane %v52, 0
      %vm56 = vcmask 261120
      %57 = vst.msk [vmem:[#allocation7] sm:$0xff] %vm56, %v54
      %58 = vst.msk [vmem:[#allocation7 + $0x8] sm:$0xff] %vm56, %v54
    $region25: #{tpu_custom_call.1} parent=1 // pred_fallthru
      _
    %v59 = vld [vmem:[#allocation7] sm:$0xff]
    %v60 = vld [vmem:[#allocation7 + $0x8] sm:$0xff]
    %v61 = vld [vmem:[#allocation2] sm:$0xf]
    %v62 = vld [vmem:[#allocation2 + $0x4] sm:$0xf]
    %v63 = vld [vmem:[#allocation5] sm:$0xf]
    %v64 = vld [vmem:[#allocation5 + $0x4] sm:$0xf]
    %v65 = vld [vmem:[#allocation5 + $0x8] sm:$0xf]
    %v66 = vld [vmem:[#allocation5 + $0xc] sm:$0xf]
    %v69 = vunpack.c.l.b16 %v61
    %v70 = vunpack.c.l.b16 %v62
    %v71 = vpack.c.b16 %v70, %v69
    %v76 = vunpack.c.l.b16 %v63
    %v77 = vunpack.c.l.b16 %v64
    %v78 = vunpack.c.l.b16 %v65
    %v79 = vunpack.c.l.b16 %v66
    %v80 = vpack.c.b16 %v77, %v76
    %v81 = vpack.c.b16 %v79, %v78
    %vm84 = vcmask 261120
    %v86 = vsel %vm84, %v71, 0
    %88 = vmatpush.bf16.msra.mxu0 0
    %89 = vmatpush.bf16.msra.mxu0 0
    %90 = vmatpush.bf16.msra.mxu0 0
    %91 = vmatpush.bf16.msra.mxu0 0
    %92 = vmatpush.bf16.msra.mxu0 0
    %93 = vmatpush.bf16.msra.mxu0 0
    %94 = vmatpush.bf16.msra.mxu0 %v81
    %95 = vmatpush.bf16.msra.mxu0 %v80
    %96 = vmatmul.bf16.gmra.mxu0 %v86
    %v97 = vpop.f32.mrf.mxu0
    %v98 = vadd.f32 0.0, %v97
    %v99 = vpop.f32.mrf.mxu0
    %v100 = vadd.f32 0.0, %v99
    %101 = vdwg.mxu0
    %v102 = vadd.f32 %v59, %v98
    %v103 = vadd.f32 %v60, %v100
    %104 = vst.msk [vmem:[#allocation7] sm:$0xff] %vm84, %v102
    %105 = vst.msk [vmem:[#allocation7 + $0x8] sm:$0xff] %vm84, %v103
    // Predicated region
    $region26: #{tpu_custom_call.1} parent=1 // pred_check
      _
    $region27: #{tpu_custom_call.1} parent=1 // pred_check_branch
      %107 = sbr.rel (0) target = $region29
    $region28: #{tpu_custom_call.1} parent=1 // pred_region
      %109 = vsyncadd [#allocation4], 0
      %s110 = sshll.u32 [#allocation7], 4
      %s111 = int_to_ptr.vmem [resolvable:$true] %s110
      %s112 = sshll.u32 %s3, 4
      %s113 = int_to_ptr.hbm [resolvable:$true] %s112
      %118 = dma.vmem_to_hbm [thread:$0]  %s111, 256, %s113, [#allocation4], 128, 128, 8
    $region29: #{tpu_custom_call.1} parent=1 // pred_fallthru
      _
    // Predicated region
    $region30: #{tpu_custom_call.1} parent=1 // pred_check
      _
    $region31: #{tpu_custom_call.1} parent=1 // pred_check_branch
      %120 = sbr.rel (0) target = $region33
    $region32: #{tpu_custom_call.1} parent=1 // pred_region
      %122 = dma.done [#allocation4], 256
    $region33: #{tpu_custom_call.1} parent=1 // pred_fallthru
      _
    %123 = vsyncpa [#allocation3], 1
    %124 = vsyncpa [#allocation6], 1
    %125 = vsyncpa [#allocation4], 1

</llo_original>
